<compile_context>
chip_gen: v5e
topology: v5e:2x2
jax: 0.10.0
libtpu: 0.0.40
codegen_flags: <defaults>
</compile_context>

<pallas_src>
import functools

import jax
import jax.numpy as jnp
from jax.experimental import pallas as pl
from jax.experimental.pallas import tpu as pltpu


# ---------------------------------------------------------------------------
# Helpers / constants
# ---------------------------------------------------------------------------
def _round_up(x, m):
    return ((x + m - 1) // m) * m


class Keys:
    """Deterministic key stream."""

    def __init__(self, key):
        self.key = key
        self.i = 0

    def next(self):
        self.i += 1
        return jax.random.fold_in(self.key, self.i)


M_PAD = 64                            # shared padded M (B*H*W <= 64 here) -> few kernel shapes
MAX_TK = 4096                         # upper bound on the K tile
GEMM_BLOCK_BYTES = 10 * 1024 * 1024   # bf16 weight-block budget (single-weight GEMM)
GEGLU_BLOCK_BYTES = 5 * 1024 * 1024   # per-weight budget for the two-weight GEGLU GEMM
VMEM_LIMIT = 48 * 1024 * 1024         # < 64 MiB so it is valid on v7x as well as v5e/v6e
# TODO(synk): on v5e/v6e (128 MiB VMEM) the block budgets / MAX_TK could be 2-3x larger
# and the weight BlockSpec could use pipeline_mode=pl.Buffered(3); kept at v7x-safe values.


def _plan_n(Np):
    """Pick TN: multiple of 128, TN | Np, <= ~1536, preferring >=2 tiles for large Np."""
    units = Np // 128
    divisors = sorted({Np // nn for nn in range(1, units + 1) if units % nn == 0},
                      reverse=True)
    tn = next((d for d in divisors if d <= 1536), 128)
    if tn == Np and Np >= 1280:
        for d in divisors:                       # engage the second core on v7x
            if d < Np and d >= 640:
                tn = d
                break
    return tn


def _plan_k(K, TN, max_block_bytes):
    """Pick (Kp, TK) with TK | Kp, minimal zero padding, TK x TN bf16 block under budget."""
    cap = (max_block_bytes // (2 * TN)) // 128 * 128
    cap = max(128, min(MAX_TK, cap))
    Kp = _round_up(K, 128)
    if Kp <= cap:
        return Kp, Kp
    n_tiles = -(-Kp // cap)
    TK = _round_up(-(-Kp // n_tiles), 128)
    return TK * n_tiles, TK


# ---------------------------------------------------------------------------
# Init-time weight packing: weights live in HBM already flattened / padded /
# cast to bf16, so there are no per-call weight copies or transposes.
# ---------------------------------------------------------------------------
def pack_gemm(w, b, max_block_bytes=GEMM_BLOCK_BYTES):
    """w: (K, N) f32, b: (N,) f32 or None  ->  padded bf16 weight + f32 bias row."""
    K, N = w.shape
    Np = _round_up(N, 128)
    TN = _plan_n(Np)
    Kp, TK = _plan_k(K, TN, max_block_bytes)
    wp = jnp.pad(w.astype(jnp.bfloat16), ((0, Kp - K), (0, Np - N)))
    bias = jnp.zeros((N,), jnp.float32) if b is None else b.astype(jnp.float32)
    bp = jnp.pad(bias.reshape(1, N), ((0, 0), (0, Np - N)))
    return {"w": wp, "b": bp, "N": N, "TK": TK, "TN": TN}


def _gemm_cost(Mp, Kp, Np, n_weights=1):
    return pl.CostEstimate(
        flops=2 * Mp * Kp * Np * n_weights,
        transcendentals=0,
        bytes_accessed=2 * (Mp * Kp + n_weights * Kp * Np + Mp * Np) + 4 * Np * n_weights)


# ---------------------------------------------------------------------------
# Pallas kernel 1: weight-streaming matmul, fused bias (+ optional residual add)
# grid = (N tiles ["parallel"], K tiles ["arbitrary"]), f32 accumulator, bf16 out
# ---------------------------------------------------------------------------
def _mm_kernel(a_ref, w_ref, b_ref, o_ref, acc_ref):
    @pl.when(pl.program_id(1) == 0)
    def _():
        acc_ref[...] = jnp.zeros_like(acc_ref)

    acc_ref[...] += jnp.dot(a_ref[...], w_ref[...],
                            preferred_element_type=jnp.float32)

    @pl.when(pl.program_id(1) == pl.num_programs(1) - 1)
    def _():
        o_ref[...] = (acc_ref[...] + b_ref[...]).astype(o_ref.dtype)


def _mm_res_kernel(a_ref, w_ref, b_ref, r_ref, o_ref, acc_ref):
    @pl.when(pl.program_id(1) == 0)
    def _():
        acc_ref[...] = jnp.zeros_like(acc_ref)

    acc_ref[...] += jnp.dot(a_ref[...], w_ref[...],
                            preferred_element_type=jnp.float32)

    @pl.when(pl.program_id(1) == pl.num_programs(1) - 1)
    def _():
        o_ref[...] = (acc_ref[...] + b_ref[...]
                      + r_ref[...].astype(jnp.float32)).astype(o_ref.dtype)


@functools.partial(jax.jit, static_argnames=("tk", "tn"))
def _mm_call(a, w, b, tk, tn):
    Mp, Kp = a.shape
    Np = w.shape[1]
    return pl.pallas_call(
        _mm_kernel,
        out_shape=jax.ShapeDtypeStruct((Mp, Np), jnp.bfloat16),
        grid_spec=pltpu.PrefetchScalarGridSpec(
            num_scalar_prefetch=0,
            grid=(Np // tn, Kp // tk),
            in_specs=[pl.BlockSpec((Mp, tk), lambda n, k: (0, k)),
                      pl.BlockSpec((tk, tn), lambda n, k: (k, n)),
                      pl.BlockSpec((1, tn), lambda n, k: (0, n))],
            out_specs=pl.BlockSpec((Mp, tn), lambda n, k: (0, n)),
            scratch_shapes=[pltpu.VMEM((Mp, tn), jnp.float32)]),
        compiler_params=pltpu.CompilerParams(
            dimension_semantics=("parallel", "arbitrary"),
            vmem_limit_bytes=VMEM_LIMIT),
        cost_estimate=_gemm_cost(Mp, Kp, Np),
    )(a, w, b)


@functools.partial(jax.jit, static_argnames=("tk", "tn"))
def _mm_res_call(a, w, b, r, tk, tn):
    Mp, Kp = a.shape
    Np = w.shape[1]
    return pl.pallas_call(
        _mm_res_kernel,
        out_shape=jax.ShapeDtypeStruct((Mp, Np), jnp.bfloat16),
        grid_spec=pltpu.PrefetchScalarGridSpec(
            num_scalar_prefetch=0,
            grid=(Np // tn, Kp // tk),
            in_specs=[pl.BlockSpec((Mp, tk), lambda n, k: (0, k)),
                      pl.BlockSpec((tk, tn), lambda n, k: (k, n)),
                      pl.BlockSpec((1, tn), lambda n, k: (0, n)),
                      pl.BlockSpec((Mp, tn), lambda n, k: (0, n))],
            out_specs=pl.BlockSpec((Mp, tn), lambda n, k: (0, n)),
            scratch_shapes=[pltpu.VMEM((Mp, tn), jnp.float32)]),
        compiler_params=pltpu.CompilerParams(
            dimension_semantics=("parallel", "arbitrary"),
            vmem_limit_bytes=VMEM_LIMIT),
        cost_estimate=_gemm_cost(Mp, Kp, Np),
    )(a, w, b, r)


def matmul_packed(a, pw, residual=None):
    """y = a @ W + b (+ residual).  a: (M, K) -> bf16 (M, N)."""
    M, K = a.shape
    Kp, Np = pw["w"].shape
    Mp = max(M_PAD, _round_up(M, 8))
    ap = jnp.pad(a.astype(jnp.bfloat16), ((0, Mp - M), (0, Kp - K)))
    if residual is None:
        y = _mm_call(ap, pw["w"], pw["b"], tk=pw["TK"], tn=pw["TN"])
    else:
        rp = jnp.pad(residual.astype(jnp.bfloat16),
                     ((0, Mp - M), (0, Np - residual.shape[1])))
        y = _mm_res_call(ap, pw["w"], pw["b"], rp, tk=pw["TK"], tn=pw["TN"])
    return y[:M, :pw["N"]]


# ---------------------------------------------------------------------------
# Pallas kernel 2: fused GEGLU  out = (x @ Wa + ba) * gelu(x @ Wg + bg)
# ---------------------------------------------------------------------------
def _geglu_kernel(a_ref, wa_ref, wg_ref, ba_ref, bg_ref, o_ref, acca_ref, accg_ref):
    @pl.when(pl.program_id(1) == 0)
    def _():
        acca_ref[...] = jnp.zeros_like(acca_ref)
        accg_ref[...] = jnp.zeros_like(accg_ref)

    a = a_ref[...]
    acca_ref[...] += jnp.dot(a, wa_ref[...], preferred_element_type=jnp.float32)
    accg_ref[...] += jnp.dot(a, wg_ref[...], preferred_element_type=jnp.float32)

    @pl.when(pl.program_id(1) == pl.num_programs(1) - 1)
    def _():
        va = acca_ref[...] + ba_ref[...]
        g = accg_ref[...] + bg_ref[...]
        # TODO(synk): tanh-approx GELU inside the kernel; PyTorch F.gelu is exact-erf.
        gelu_g = 0.5 * g * (1.0 + jnp.tanh(0.7978845608028654 *
                                           (g + 0.044715 * g * g * g)))
        o_ref[...] = (va * gelu_g).astype(o_ref.dtype)


@functools.partial(jax.jit, static_argnames=("tk", "tn"))
def _geglu_call(a, wa, wg, ba, bg, tk, tn):
    Mp, Kp = a.shape
    Np = wa.shape[1]
    return pl.pallas_call(
        _geglu_kernel,
        out_shape=jax.ShapeDtypeStruct((Mp, Np), jnp.bfloat16),
        grid_spec=pltpu.PrefetchScalarGridSpec(
            num_scalar_prefetch=0,
            grid=(Np // tn, Kp // tk),
            in_specs=[pl.BlockSpec((Mp, tk), lambda n, k: (0, k)),
                      pl.BlockSpec((tk, tn), lambda n, k: (k, n)),
                      pl.BlockSpec((tk, tn), lambda n, k: (k, n)),
                      pl.BlockSpec((1, tn), lambda n, k: (0, n)),
                      pl.BlockSpec((1, tn), lambda n, k: (0, n))],
            out_specs=pl.BlockSpec((Mp, tn), lambda n, k: (0, n)),
            scratch_shapes=[pltpu.VMEM((Mp, tn), jnp.float32),
                            pltpu.VMEM((Mp, tn), jnp.float32)]),
        compiler_params=pltpu.CompilerParams(
            dimension_semantics=("parallel", "arbitrary"),
            vmem_limit_bytes=VMEM_LIMIT),
        cost_estimate=_gemm_cost(Mp, Kp, Np, n_weights=2),
    )(a, wa, wg, ba, bg)


def geglu_packed(a, pg):
    M, K = a.shape
    pa, pgate = pg["a"], pg["g"]
    Kp, Np = pa["w"].shape
    Mp = max(M_PAD, _round_up(M, 8))
    ap = jnp.pad(a.astype(jnp.bfloat16), ((0, Mp - M), (0, Kp - K)))
    y = _geglu_call(ap, pa["w"], pgate["w"], pa["b"], pgate["b"],
                    tk=pa["TK"], tn=pa["TN"])
    return y[:M, :pa["N"]]


# ---------------------------------------------------------------------------
# Pallas kernel 3: head-batched attention  softmax(q k^T / sqrt(d)) v
# (no Dh / Skv padding: full-dim blocks are legal; scale applied to f32 scores)
# ---------------------------------------------------------------------------
def _attn_kernel(q_ref, k_ref, v_ref, o_ref, *, scale):
    s = jnp.einsum("hqd,hkd->hqk", q_ref[...], k_ref[...],
                   preferred_element_type=jnp.float32)
    s = s * scale
    s = s - jnp.max(s, axis=-1, keepdims=True)
    p = jnp.exp(s)
    p = p * pl.reciprocal(jnp.sum(p, axis=-1, keepdims=True), approx=True)
    o_ref[...] = jnp.einsum("hqk,hkd->hqd", p.astype(jnp.bfloat16), v_ref[...],
                            preferred_element_type=jnp.float32).astype(o_ref.dtype)


@functools.partial(jax.jit, static_argnames=("hb", "scale"))
def _attn_call(q, k, v, hb, scale):
    BH, Sq, Dh = q.shape
    Skv = k.shape[1]
    kern = functools.partial(_attn_kernel, scale=scale)
    return pl.pallas_call(
        kern,
        out_shape=jax.ShapeDtypeStruct((BH, Sq, Dh), jnp.bfloat16),
        grid_spec=pltpu.PrefetchScalarGridSpec(
            num_scalar_prefetch=0,
            grid=(BH // hb,),
            in_specs=[pl.BlockSpec((hb, Sq, Dh), lambda i: (i, 0, 0)),
                      pl.BlockSpec((hb, Skv, Dh), lambda i: (i, 0, 0)),
                      pl.BlockSpec((hb, Skv, Dh), lambda i: (i, 0, 0))],
            out_specs=pl.BlockSpec((hb, Sq, Dh), lambda i: (i, 0, 0))),
        compiler_params=pltpu.CompilerParams(
            dimension_semantics=("parallel",),        # heads -> second core on v7x
            vmem_limit_bytes=VMEM_LIMIT),
    )(q, k, v)


def mha(q, k, v):
    """q: (B, H, Sq, Dh), k/v: (B, H, Skv, Dh) -> (B, H, Sq, Dh) bf16."""
    # TODO(synk): at production latent sizes (S=4096) switch to a flash-style
    # online-softmax with a KV grid axis; monolithic scores fit VMEM at these sizes.
    B, Hn, Sq, Dh = q.shape
    Skv = k.shape[2]
    BH = B * Hn
    scale = float(1.0 / (Dh ** 0.5))
    hb = 4 if BH % 4 == 0 else 1
    qf = q.reshape(BH, Sq, Dh).astype(jnp.bfloat16)
    kf = k.reshape(BH, Skv, Dh).astype(jnp.bfloat16)
    vf = v.reshape(BH, Skv, Dh).astype(jnp.bfloat16)
    o = _attn_call(qf, kf, vf, hb=hb, scale=scale)
    return o.reshape(B, Hn, Sq, Dh)


# ---------------------------------------------------------------------------
# Plain-JAX glue (norms, activations, im2col, upsample).  Activations are NHWC.
# ---------------------------------------------------------------------------
def silu(x):
    xf = x.astype(jnp.float32)
    return (xf * jax.nn.sigmoid(xf)).astype(x.dtype)


def group_norm(x, p, groups=32, eps=1e-5):
    # TODO(synk): GroupNorm/LayerNorm reductions kept as plain-JAX glue (f32 math).
    B, H, W, C = x.shape
    xf = x.astype(jnp.float32).reshape(B, H, W, groups, C // groups)
    mean = xf.mean(axis=(1, 2, 4), keepdims=True)
    var = xf.var(axis=(1, 2, 4), keepdims=True)
    xn = ((xf - mean) * jax.lax.rsqrt(var + eps)).reshape(B, H, W, C)
    y = xn * p["gamma"].reshape(1, 1, 1, C) + p["beta"].reshape(1, 1, 1, C)
    return y.astype(x.dtype)


def layer_norm(x, p, eps=1e-5):
    xf = x.astype(jnp.float32)
    mean = xf.mean(-1, keepdims=True)
    var = xf.var(-1, keepdims=True)
    y = (xf - mean) * jax.lax.rsqrt(var + eps) * p["gamma"] + p["beta"]
    return y.astype(x.dtype)


def conv2d(x, p, stride=1, padding=0, residual=None):
    """x: (B, H, W, Cin) NHWC; packed conv weight is HWIO-flattened (kh*kw*Cin, Cout)."""
    pw, k = p["gemm"], p["k"]
    B, H, W, C = x.shape
    r2d = None if residual is None else residual.reshape(-1, residual.shape[-1])
    if k == 1 and stride == 1 and padding == 0:
        y = matmul_packed(x.reshape(B * H * W, C), pw, residual=r2d)
        return y.reshape(B, H, W, pw["N"])
    # TODO(synk): plain-JAX im2col; at real latent sizes stream the 9 (ki,kj) shifts
    # inside the GEMM kernel instead of materializing the 9x patches array in HBM.
    xp = jnp.pad(x, ((0, 0), (padding, padding), (padding, padding), (0, 0)))
    Hp, Wp = H + 2 * padding, W + 2 * padding
    Ho = (Hp - k) // stride + 1
    Wo = (Wp - k) // stride + 1
    cols = []
    for i in range(k):
        for j in range(k):
            cols.append(xp[:, i:i + stride * Ho:stride, j:j + stride * Wo:stride, :])
    patches = jnp.stack(cols, axis=3)                         # (B, Ho, Wo, k*k, C)
    a = patches.reshape(B * Ho * Wo, k * k * C)
    y = matmul_packed(a, pw, residual=r2d)
    return y.reshape(B, Ho, Wo, pw["N"])


def upsample_nearest2x(x):
    return jnp.repeat(jnp.repeat(x, 2, axis=1), 2, axis=2)


# ---------------------------------------------------------------------------
# Parameter init (deterministic) with init-time packing
# ---------------------------------------------------------------------------
def init_linear(kg, din, dout, bias=True):
    w = jax.random.normal(kg.next(), (din, dout), jnp.float32) * (1.0 / din ** 0.5)
    b = jnp.zeros((dout,), jnp.float32) if bias else None
    return pack_gemm(w, b)


def init_conv(kg, cin, cout, k):
    fan_in = cin * k * k
    w = jax.random.normal(kg.next(), (cout, cin, k, k), jnp.float32) * (1.0 / fan_in ** 0.5)
    w2d = w.transpose(2, 3, 1, 0).reshape(k * k * cin, cout)  # HWIO, matches NHWC patches
    b = jnp.zeros((cout,), jnp.float32)
    return {"gemm": pack_gemm(w2d, b), "k": k}


def init_norm(c):
    return {"gamma": jnp.ones((c,), jnp.float32), "beta": jnp.zeros((c,), jnp.float32)}


def init_geglu(kg, c):
    w = jax.random.normal(kg.next(), (c, 8 * c), jnp.float32) * (1.0 / c ** 0.5)
    b = jnp.zeros((8 * c,), jnp.float32)
    n4 = 4 * c
    return {"a": pack_gemm(w[:, :n4], b[:n4], GEGLU_BLOCK_BYTES),
            "g": pack_gemm(w[:, n4:], b[n4:], GEGLU_BLOCK_BYTES)}


def init_resblock(kg, cin, cout, d_time=1280):
    return {
        "gn1": init_norm(cin),
        "conv_feat": init_conv(kg, cin, cout, 3),
        "lin_time": init_linear(kg, d_time, cout),
        "gn2": init_norm(cout),
        "conv_merged": init_conv(kg, cout, cout, 3),
        "res": None if cin == cout else init_conv(kg, cin, cout, 1),
    }


def init_attnblock(kg, n_head, n_embd, d_ctx=768):
    c = n_head * n_embd
    wk = jax.random.normal(kg.next(), (d_ctx, c), jnp.float32) * (1.0 / d_ctx ** 0.5)
    wv = jax.random.normal(kg.next(), (d_ctx, c), jnp.float32) * (1.0 / d_ctx ** 0.5)
    return {
        "n_head": n_head,
        "gn": init_norm(c),
        "conv_in": init_conv(kg, c, c, 1),
        "ln1": init_norm(c),
        "attn1_in": init_linear(kg, c, 3 * c, bias=False),
        "attn1_out": init_linear(kg, c, c, bias=True),
        "ln2": init_norm(c),
        "attn2_q": init_linear(kg, c, c, bias=False),
        "attn2_kv": pack_gemm(jnp.concatenate([wk, wv], axis=1), None),  # fused K|V
        "attn2_out": init_linear(kg, c, c, bias=True),
        "ln3": init_norm(c),
        "geglu1": init_geglu(kg, c),
        "geglu2": init_linear(kg, 4 * c, c),
        "conv_out": init_conv(kg, c, c, 1),
    }


def init_upsample(kg, c):
    return {"conv": init_conv(kg, c, c, 3)}


def init_unet(kg):
    enc = [
        [("conv", init_conv(kg, 4, 320, 3), {"stride": 1})],
        [("res", init_resblock(kg, 320, 320)), ("attn", init_attnblock(kg, 8, 40))],
        [("res", init_resblock(kg, 320, 320)), ("attn", init_attnblock(kg, 8, 40))],
        [("conv", init_conv(kg, 320, 320, 3), {"stride": 2})],
        [("res", init_resblock(kg, 320, 640)), ("attn", init_attnblock(kg, 8, 80))],
        [("res", init_resblock(kg, 640, 640)), ("attn", init_attnblock(kg, 8, 80))],
        [("conv", init_conv(kg, 640, 640, 3), {"stride": 2})],
        [("res", init_resblock(kg, 640, 1280)), ("attn", init_attnblock(kg, 8, 160))],
        [("res", init_resblock(kg, 1280, 1280)), ("attn", init_attnblock(kg, 8, 160))],
        [("conv", init_conv(kg, 1280, 1280, 3), {"stride": 2})],
        [("res", init_resblock(kg, 1280, 1280))],
        [("res", init_resblock(kg, 1280, 1280))],
    ]
    bottleneck = [
        ("res", init_resblock(kg, 1280, 1280)),
        ("attn", init_attnblock(kg, 8, 160)),
        ("res", init_resblock(kg, 1280, 1280)),
    ]
    dec = [
        [("res", init_resblock(kg, 2560, 1280))],
        [("res", init_resblock(kg, 2560, 1280))],
        [("res", init_resblock(kg, 2560, 1280)), ("up", init_upsample(kg, 1280))],
        [("res", init_resblock(kg, 2560, 1280)), ("attn", init_attnblock(kg, 8, 160))],
        [("res", init_resblock(kg, 2560, 1280)), ("attn", init_attnblock(kg, 8, 160))],
        [("res", init_resblock(kg, 1920, 1280)), ("attn", init_attnblock(kg, 8, 160)),
         ("up", init_upsample(kg, 1280))],
        [("res", init_resblock(kg, 1920, 640)), ("attn", init_attnblock(kg, 8, 80))],
        [("res", init_resblock(kg, 1280, 640)), ("attn", init_attnblock(kg, 8, 80))],
        [("res", init_resblock(kg, 960, 640)), ("attn", init_attnblock(kg, 8, 80)),
         ("up", init_upsample(kg, 640))],
        [("res", init_resblock(kg, 960, 320)), ("attn", init_attnblock(kg, 8, 40))],
        [("res", init_resblock(kg, 640, 320)), ("attn", init_attnblock(kg, 8, 40))],
        [("res", init_resblock(kg, 640, 320)), ("attn", init_attnblock(kg, 8, 40))],
    ]
    return {"encoders": enc, "bottleneck": bottleneck, "decoders": dec}


# ---------------------------------------------------------------------------
# Forward passes (activations NHWC / (B, S, C))
# ---------------------------------------------------------------------------
def self_attention(xn, sr, p_in, p_out, n_head):
    B, S, C = xn.shape
    dh = C // n_head
    qkv = matmul_packed(xn.reshape(B * S, C), p_in)               # fused QKV
    q, k, v = jnp.split(qkv, 3, axis=-1)

    def heads(t):
        return t.reshape(B, S, n_head, dh).transpose(0, 2, 1, 3)

    o = mha(heads(q), heads(k), heads(v))
    o = o.transpose(0, 2, 1, 3).reshape(B * S, C)
    y = matmul_packed(o, p_out, residual=sr.reshape(B * S, C))    # + short_residual fused
    return y.reshape(B, S, C)


def cross_attention(xn, sr, ctx, p, n_head):
    B, S, C = xn.shape
    Sc = ctx.shape[1]
    dh = C // n_head
    q = matmul_packed(xn.reshape(B * S, C), p["attn2_q"])
    kv = matmul_packed(ctx.reshape(B * Sc, ctx.shape[-1]), p["attn2_kv"])  # fused K|V
    k, v = jnp.split(kv, 2, axis=-1)

    def heads(t, s):
        return t.reshape(B, s, n_head, dh).transpose(0, 2, 1, 3)

    o = mha(heads(q, S), heads(k, Sc), heads(v, Sc))
    o = o.transpose(0, 2, 1, 3).reshape(B * S, C)
    y = matmul_packed(o, p["attn2_out"], residual=sr.reshape(B * S, C))
    return y.reshape(B, S, C)


def apply_resblock(p, latent, time):
    residual = latent                                             # (B, H, W, Cin)
    x = group_norm(latent, p["gn1"])
    x = silu(x)
    x = conv2d(x, p["conv_feat"], stride=1, padding=1)
    t = silu(time)
    t = matmul_packed(t, p["lin_time"])                           # (B, Cout) bf16
    # TODO(synk): for B == 1 the time broadcast could be an extra bias row in the
    # conv_feat epilogue; kept as an XLA broadcast-add for general batch size.
    merged = x + t[:, None, None, :].astype(x.dtype)
    merged = group_norm(merged, p["gn2"])
    merged = silu(merged)
    if p["res"] is not None:
        residual = conv2d(residual, p["res"], stride=1, padding=0)
    # conv_merged with the residual add fused into the GEMM epilogue
    return conv2d(merged, p["conv_merged"], stride=1, padding=1, residual=residual)


def apply_attnblock(p, latent, context):
    n_head = p["n_head"]
    long_res = latent                                             # (B, H, W, C)
    x = group_norm(latent, p["gn"])
    x = conv2d(x, p["conv_in"], stride=1, padding=0)
    B, H, W, C = x.shape
    S = H * W
    x = x.reshape(B, S, C)                                        # no transpose needed (NHWC)
    sr = x
    x = self_attention(layer_norm(x, p["ln1"]), sr, p["attn1_in"], p["attn1_out"], n_head)
    sr = x
    x = cross_attention(layer_norm(x, p["ln2"]), sr, context, p, n_head)
    sr = x
    xn = layer_norm(x, p["ln3"])
    a = geglu_packed(xn.reshape(B * S, C), p["geglu1"])           # fused a * gelu(gate)
    x = matmul_packed(a, p["geglu2"], residual=sr.reshape(B * S, C)).reshape(B, S, C)
    x = x.reshape(B, H, W, C)
    return conv2d(x, p["conv_out"], stride=1, padding=0, residual=long_res)


def apply_upsample(p, x):
    return conv2d(upsample_nearest2x(x), p["conv"], stride=1, padding=1)


def apply_seq(layers, x, context, time):
    for entry in layers:
        kind, p = entry[0], entry[1]
        if kind == "conv":
            x = conv2d(x, p, stride=entry[2]["stride"], padding=1)
        elif kind == "res":
            x = apply_resblock(p, x, time)
        elif kind == "attn":
            x = apply_attnblock(p, x, context)
        elif kind == "up":
            x = apply_upsample(p, x)
    return x


def unet_forward(params, x, context, time):
    """x: (B, 4, H, W) NCHW f32 -> (B, 320, H, W) NCHW f32 (internally NHWC bf16)."""
    x = x.transpose(0, 2, 3, 1).astype(jnp.bfloat16)              # single NCHW->NHWC entry
    context = context.astype(jnp.bfloat16)
    skips = []
    for layers in params["encoders"]:
        x = apply_seq(layers, x, context, time)
        skips.append(x)
    x = apply_seq(params["bottleneck"], x, context, time)
    for layers in params["decoders"]:
        x = jnp.concatenate([x, skips.pop()], axis=-1)
        x = apply_seq(layers, x, context, time)
    return x.transpose(0, 3, 1, 2).astype(jnp.float32)            # back to NCHW


# ---------------------------------------------------------------------------
# Main
# ---------------------------------------------------------------------------
if __name__ == "__main__":
    root = jax.random.PRNGKey(0)
    kg = Keys(jax.random.fold_in(root, 12345))
    params = init_unet(kg)

    kx, kc, kt = jax.random.split(root, 3)
    B, H, W = 1, 8, 8                   # spatial must be divisible by 8 (3 downsamples)
    x = jax.random.normal(kx, (B, 4, H, W), jnp.float32)
    context = jax.random.normal(kc, (B, 16, 768), jnp.float32)
    time = jax.random.normal(kt, (1, 1280), jnp.float32)

    out = unet_forward(params, x, context, time)
    out = jax.block_until_ready(out)
    assert out.shape == (B, 320, H, W), out.shape
    assert bool(jnp.all(jnp.isfinite(out)))
    print("KERNEL_OK")
</pallas_src>

<mosaic_0001>
module attributes {stable_mosaic.version = 11 : i64} {
  func.func @_mm_kernel(%arg0: i32, %arg1: i32, %arg2: memref<64x128xbf16, #tpu.memory_space<vmem>>, %arg3: memref<128x384xbf16, #tpu.memory_space<vmem>>, %arg4: memref<1x384xf32, #tpu.memory_space<vmem>>, %arg5: memref<64x384xbf16, #tpu.memory_space<vmem>>, %arg6: memref<64x384xf32, #tpu.memory_space<vmem>>) attributes {dimension_semantics = [#tpu.dimension_semantics<parallel>, #tpu.dimension_semantics<arbitrary>], iteration_bounds = array<i64: 1, 1>, scalar_prefetch = 0 : i64, scratch_operands = 1 : i64, tpu.core_type = #tpu.core_type<tc>, window_params = [{transform_indices = @transform_0, window_bounds = array<i64: 64, 128>}, {transform_indices = @transform_1, window_bounds = array<i64: 128, 384>}, {transform_indices = @transform_2, window_bounds = array<i64: 1, 384>}, {transform_indices = @transform_3, window_bounds = array<i64: 64, 384>}]} {
    %c0_i32 = arith.constant 0 : i32
    %0 = arith.cmpi eq, %arg1, %c0_i32 : i32
    %1 = arith.extui %0 : i1 to i32
    %c0_i32_0 = arith.constant 0 : i32
    %2 = arith.cmpi ne, %1, %c0_i32_0 : i32
    scf.if %2 {
      %cst_10 = arith.constant 0.000000e+00 : f32
      %12 = vector.broadcast %cst_10 : f32 to vector<64x384xf32>
      %c0_11 = arith.constant 0 : index
      %c0_12 = arith.constant 0 : index
      %13 = vector.load %arg6[%c0_11, %c0_12] : memref<64x384xf32, #tpu.memory_space<vmem>>, vector<64x384xf32>
      tpu.vector_store %arg6[%c0_11, %c0_12], %12 {strides = array<i32>} : memref<64x384xf32, #tpu.memory_space<vmem>>, vector<64x384xf32>,
    } else {
    }
    %c0 = arith.constant 0 : index
    %c0_1 = arith.constant 0 : index
    %3 = vector.load %arg6[%c0, %c0_1] : memref<64x384xf32, #tpu.memory_space<vmem>>, vector<64x384xf32>
    %c0_2 = arith.constant 0 : index
    %c0_3 = arith.constant 0 : index
    %4 = vector.load %arg2[%c0_2, %c0_3] : memref<64x128xbf16, #tpu.memory_space<vmem>>, vector<64x128xbf16>
    %c0_4 = arith.constant 0 : index
    %c0_5 = arith.constant 0 : index
    %5 = vector.load %arg3[%c0_4, %c0_5] : memref<128x384xbf16, #tpu.memory_space<vmem>>, vector<128x384xbf16>
    %cst = arith.constant dense<0.000000e+00> : vector<64x384xf32>
    %6 = tpu.matmul %4, %5, %cst {dimension_numbers = #tpu.dot_dimension_numbers<[1], [0], [0], [1], [0, 0, 1, 1], [], []>} : vector<64x128xbf16>, vector<128x384xbf16>, vector<64x384xf32> -> vector<64x384xf32>
    %7 = arith.addf %3, %6 : vector<64x384xf32>
    %c0_6 = arith.constant 0 : index
    %c0_7 = arith.constant 0 : index
    %8 = vector.load %arg6[%c0_6, %c0_7] : memref<64x384xf32, #tpu.memory_space<vmem>>, vector<64x384xf32>
    tpu.vector_store %arg6[%c0_6, %c0_7], %7 {strides = array<i32>} : memref<64x384xf32, #tpu.memory_space<vmem>>, vector<64x384xf32>,
    %c0_i32_8 = arith.constant 0 : i32
    %9 = arith.cmpi eq, %arg1, %c0_i32_8 : i32
    %10 = arith.extui %9 : i1 to i32
    %c0_i32_9 = arith.constant 0 : i32
    %11 = arith.cmpi ne, %10, %c0_i32_9 : i32
    scf.if %11 {
      %c0_10 = arith.constant 0 : index
      %c0_11 = arith.constant 0 : index
      %12 = vector.load %arg6[%c0_10, %c0_11] : memref<64x384xf32, #tpu.memory_space<vmem>>, vector<64x384xf32>
      %c0_12 = arith.constant 0 : index
      %c0_13 = arith.constant 0 : index
      %13 = vector.load %arg4[%c0_12, %c0_13] : memref<1x384xf32, #tpu.memory_space<vmem>>, vector<1x384xf32>
      %14 = vector.broadcast %13 : vector<1x384xf32> to vector<64x384xf32>
      %15 = arith.addf %12, %14 : vector<64x384xf32>
      %16 = arith.truncf %15 : vector<64x384xf32> to vector<64x384xbf16>
      %c0_14 = arith.constant 0 : index
      %c0_15 = arith.constant 0 : index
      %17 = vector.load %arg5[%c0_14, %c0_15] : memref<64x384xbf16, #tpu.memory_space<vmem>>, vector<64x384xbf16>
      tpu.vector_store %arg5[%c0_14, %c0_15], %16 {strides = array<i32>} : memref<64x384xbf16, #tpu.memory_space<vmem>>, vector<64x384xbf16>,
    } else {
    }
    return
  }
  func.func @transform_0(%arg0: i32, %arg1: i32) -> (i32, i32) {
    %c0_i32 = arith.constant 0 : i32
    %c0_i32_0 = arith.constant 0 : i32
    return %c0_i32, %arg1 : i32, i32
  }
  func.func @transform_1(%arg0: i32, %arg1: i32) -> (i32, i32) {
    %c0_i32 = arith.constant 0 : i32
    return %arg1, %arg0 : i32, i32
  }
  func.func @transform_2(%arg0: i32, %arg1: i32) -> (i32, i32) {
    %c0_i32 = arith.constant 0 : i32
    %c0_i32_0 = arith.constant 0 : i32
    return %c0_i32, %arg0 : i32, i32
  }
  func.func @transform_3(%arg0: i32, %arg1: i32) -> (i32, i32) {
    %c0_i32 = arith.constant 0 : i32
    %c0_i32_0 = arith.constant 0 : i32
    return %c0_i32, %arg0 : i32, i32
  }
}

</mosaic_0001>

<llo_original>
// kernel: _mm_call.1
$region0: #{_mm_call.1}
  #allocation0 [shape = 'u32[]', space=smem, size = 0x4, offset = 0x4, fixed_abs, tag = 'smem constant byte address 0x4 - core index']
  #allocation1 [shape = 'u32[72,128]{1,0:T(1,128)}', space=vmem, size = 0x9000, scoped, tag = 'internal scratch']
  #allocation2 [shape = 'f32[64,384]{1,0:T(8,128)}', space=vmem, size = 0x18000, scoped, tag = 'scratch operand']
  %s0 = inlined_call_operand.hbm [shape: bf16[64,128], index: 0, kind: input, shape index: {}]
  %s1 = inlined_call_operand.hbm [shape: bf16[128,384], index: 1, kind: input, shape index: {}]
  %s2 = inlined_call_operand.hbm [shape: f32[1,384], index: 2, kind: input, shape index: {}]
  %s3 = inlined_call_operand.hbm [shape: bf16[64,384], index: 3, kind: output, shape index: {}]
  %s4 = sld [smem:[#allocation0]]
  $region42: #{_mm_call.1} parent=0
    _
  %s6 = ssub.s32 1, %s4
  %s7 = scalar_select 0, %s6, %s4
  $region1: #{_mm_call.1} parent=0
    #allocation3 [shape = 'u8[16384]{0}', space=vmem, size = 0x4000, scoped, tag = 'input window, operand 0, single buffered']
    #allocation4 [shape = 's32[1]{0}', space=sflag, size = 0x4, scoped, tag = 'scoped memory for _mm_call.1']
    #allocation5 [shape = 's32[1]{0}', space=sflag, size = 0x4, scoped, tag = 'scoped memory for _mm_call.1']
    #allocation6 [shape = 'u8[98304]{0}', space=vmem, size = 0x18000, scoped, tag = 'input window, operand 1, single buffered']
    #allocation7 [shape = 's32[1]{0}', space=sflag, size = 0x4, scoped, tag = 'scoped memory for _mm_call.1']
    #allocation8 [shape = 'u8[1536]{0}', space=vmem, size = 0x800, scoped, tag = 'input window, operand 2, single buffered']
    #allocation9 [shape = 'u8[49152]{0}', space=vmem, size = 0xc000, scoped, tag = 'output window, operand 0, single buffered']
    %8 = vsyncpa [#allocation4], 0
    %9 = vsyncpa [#allocation7], 0
    %10 = vsyncpa [#allocation5], 0
    // Predicated region
    $region2: #{_mm_call.1} parent=1 // pred_check
      _
    $region3: #{_mm_call.1} parent=1 // pred_check_branch
      %12 = sbr.rel (0) target = $region5
    $region4: #{_mm_call.1} parent=1 // pred_region
      %14 = vsyncadd [#allocation4], 0
      %s15 = sshll.u32 %s0, 4
      %s16 = int_to_ptr.hbm [resolvable:$true] %s15
      %s17 = sshll.u32 [#allocation3], 4
      %s18 = int_to_ptr.vmem [resolvable:$true] %s17
      %23 = dma.hbm_to_vmem [thread:$0]  %s16, 512, %s18, [#allocation4], 64, 64, 4
    $region5: #{_mm_call.1} parent=1 // pred_fallthru
      _
    // Predicated region
    $region6: #{_mm_call.1} parent=1 // pred_check
      _
    $region7: #{_mm_call.1} parent=1 // pred_check_branch
      %25 = sbr.rel (0) target = $region9
    $region8: #{_mm_call.1} parent=1 // pred_region
      %27 = vsyncadd [#allocation7], 0
      %s28 = sshll.u32 %s1, 4
      %s29 = int_to_ptr.hbm [resolvable:$true] %s28
      %s30 = sshll.u32 [#allocation6], 4
      %s31 = int_to_ptr.vmem [resolvable:$true] %s30
      %36 = dma.hbm_to_vmem [thread:$0]  %s29, 3072, %s31, [#allocation7], 192, 192, 12
    $region9: #{_mm_call.1} parent=1 // pred_fallthru
      _
    // Predicated region
    $region10: #{_mm_call.1} parent=1 // pred_check
      _
    $region11: #{_mm_call.1} parent=1 // pred_check_branch
      %38 = sbr.rel (0) target = $region13
    $region12: #{_mm_call.1} parent=1 // pred_region
      %40 = vsyncadd [#allocation7], 0
      %s42 = sshll.u32 %s2, 4
      %s43 = int_to_ptr.hbm [resolvable:$true] %s42
      %s44 = sshll.u32 [#allocation8], 4
      %s45 = int_to_ptr.vmem [resolvable:$true] %s44
      %47 = dma.hbm_to_vmem [thread:$0]  %s43, 48, %s45, [#allocation7]
    $region13: #{_mm_call.1} parent=1 // pred_fallthru
      _
    // Predicated region
    $region14: #{_mm_call.1} parent=1 // pred_check
      _
    $region15: #{_mm_call.1} parent=1 // pred_check_branch
      %49 = sbr.rel (0) target = $region17
    $region16: #{_mm_call.1} parent=1 // pred_region
      %51 = dma.done [#allocation4], 512
    $region17: #{_mm_call.1} parent=1 // pred_fallthru
      _
    // Predicated region
    $region18: #{_mm_call.1} parent=1 // pred_check
      _
    $region19: #{_mm_call.1} parent=1 // pred_check_branch
      %53 = sbr.rel (0) target = $region21
    $region20: #{_mm_call.1} parent=1 // pred_region
      %55 = dma.done [#allocation7], 3072
    $region21: #{_mm_call.1} parent=1 // pred_fallthru
      _
    // Predicated region
    $region22: #{_mm_call.1} parent=1 // pred_check
      _
    $region23: #{_mm_call.1} parent=1 // pred_check_branch
      %57 = sbr.rel (0) target = $region25
    $region24: #{_mm_call.1} parent=1 // pred_region
      %59 = dma.done [#allocation7], 48
    $region25: #{_mm_call.1} parent=1 // pred_fallthru
      _
    %p60 = scmp.eq.s32.totalorder 0, 0
    // Predicated region
    $region26: #{_mm_call.1} parent=1 // pred_check
      %p61 = pneg %p60
    $region27: #{_mm_call.1} parent=1 // pred_check_branch
      %63 = sbr.rel (%p61) target = $region29
    $region28: #{_mm_call.1} parent=1 // pred_region
      %64 = vst [vmem:[#allocation2] sm:$0xff] 0.0
      %65 = vst [vmem:[#allocation2 + $0x8] sm:$0xff] 0.0
      %66 = vst [vmem:[#allocation2 + $0x10] sm:$0xff] 0.0
      %67 = vst [vmem:[#allocation2 + $0x18] sm:$0xff] 0.0
      %68 = vst [vmem:[#allocation2 + $0x20] sm:$0xff] 0.0
      %69 = vst [vmem:[#allocation2 + $0x28] sm:$0xff] 0.0
      %70 = vst [vmem:[#allocation2 + $0x30] sm:$0xff] 0.0
      %71 = vst [vmem:[#allocation2 + $0x38] sm:$0xff] 0.0
      %72 = vst [vmem:[#allocation2 + $0x40] sm:$0xff] 0.0
      %73 = vst [vmem:[#allocation2 + $0x48] sm:$0xff] 0.0
      %74 = vst [vmem:[#allocation2 + $0x50] sm:$0xff] 0.0
      %75 = vst [vmem:[#allocation2 + $0x58] sm:$0xff] 0.0
      %76 = vst [vmem:[#allocation2 + $0x60] sm:$0xff] 0.0
      %77 = vst [vmem:[#allocation2 + $0x68] sm:$0xff] 0.0
      %78 = vst [vmem:[#allocation2 + $0x70] sm:$0xff] 0.0
      %79 = vst [vmem:[#allocation2 + $0x78] sm:$0xff] 0.0
      %80 = vst [vmem:[#allocation2 + $0x80] sm:$0xff] 0.0
      %81 = vst [vmem:[#allocation2 + $0x88] sm:$0xff] 0.0
      %82 = vst [vmem:[#allocation2 + $0x90] sm:$0xff] 0.0
      %83 = vst [vmem:[#allocation2 + $0x98] sm:$0xff] 0.0
      %84 = vst [vmem:[#allocation2 + $0xa0] sm:$0xff] 0.0
      %85 = vst [vmem:[#allocation2 + $0xa8] sm:$0xff] 0.0
      %86 = vst [vmem:[#allocation2 + $0xb0] sm:$0xff] 0.0
      %87 = vst [vmem:[#allocation2 + $0xb8] sm:$0xff] 0.0
    $region29: #{_mm_call.1} parent=1 // pred_fallthru
      _
    %v88 = vld [vmem:[#allocation2] sm:$0xff]
    %v89 = vld [vmem:[#allocation2 + $0x8] sm:$0xff]
    %v90 = vld [vmem:[#allocation2 + $0x10] sm:$0xff]
    %v91 = vld [vmem:[#allocation2 + $0x18] sm:$0xff]
    %v92 = vld [vmem:[#allocation2 + $0x20] sm:$0xff]
    %v93 = vld [vmem:[#allocation2 + $0x28] sm:$0xff]
    %v94 = vld [vmem:[#allocation2 + $0x30] sm:$0xff]
    %v95 = vld [vmem:[#allocation2 + $0x38] sm:$0xff]
    %v96 = vld [vmem:[#allocation2 + $0x40] sm:$0xff]
    %v97 = vld [vmem:[#allocation2 + $0x48] sm:$0xff]
    %v98 = vld [vmem:[#allocation2 + $0x50] sm:$0xff]
    %v99 = vld [vmem:[#allocation2 + $0x58] sm:$0xff]
    %v100 = vld [vmem:[#allocation2 + $0x60] sm:$0xff]
    %v101 = vld [vmem:[#allocation2 + $0x68] sm:$0xff]
    %v102 = vld [vmem:[#allocation2 + $0x70] sm:$0xff]
    %v103 = vld [vmem:[#allocation2 + $0x78] sm:$0xff]
    %v104 = vld [vmem:[#allocation2 + $0x80] sm:$0xff]
    %v105 = vld [vmem:[#allocation2 + $0x88] sm:$0xff]
    %v106 = vld [vmem:[#allocation2 + $0x90] sm:$0xff]
    %v107 = vld [vmem:[#allocation2 + $0x98] sm:$0xff]
    %v108 = vld [vmem:[#allocation2 + $0xa0] sm:$0xff]
    %v109 = vld [vmem:[#allocation2 + $0xa8] sm:$0xff]
    %v110 = vld [vmem:[#allocation2 + $0xb0] sm:$0xff]
    %v111 = vld [vmem:[#allocation2 + $0xb8] sm:$0xff]
    %v112 = vld [vmem:[#allocation3] sm:$0xf]
    %v113 = vld [vmem:[#allocation3 + $0x4] sm:$0xf]
    %v114 = vld [vmem:[#allocation3 + $0x8] sm:$0xf]
    %v115 = vld [vmem:[#allocation3 + $0xc] sm:$0xf]
    %v116 = vld [vmem:[#allocation3 + $0x10] sm:$0xf]
    %v117 = vld [vmem:[#allocation3 + $0x14] sm:$0xf]
    %v118 = vld [vmem:[#allocation3 + $0x18] sm:$0xf]
    %v119 = vld [vmem:[#allocation3 + $0x1c] sm:$0xf]
    %v120 = vld [vmem:[#allocation6] sm:$0xff]
    %v121 = vld [vmem:[#allocation6 + $0x8] sm:$0xf]
    %v122 = vld [vmem:[#allocation6 + $0xc] sm:$0xff]
    %v123 = vld [vmem:[#allocation6 + $0x14] sm:$0xf]
    %v124 = vld [vmem:[#allocation6 + $0x18] sm:$0xff]
    %v125 = vld [vmem:[#allocation6 + $0x20] sm:$0xf]
    %v126 = vld [vmem:[#allocation6 + $0x24] sm:$0xff]
    %v127 = vld [vmem:[#allocation6 + $0x2c] sm:$0xf]
    %v128 = vld [vmem:[#allocation6 + $0x30] sm:$0xff]
    %v129 = vld [vmem:[#allocation6 + $0x38] sm:$0xf]
    %v130 = vld [vmem:[#allocation6 + $0x3c] sm:$0xff]
    %v131 = vld [vmem:[#allocation6 + $0x44] sm:$0xf]
    %v132 = vld [vmem:[#allocation6 + $0x48] sm:$0xff]
    %v133 = vld [vmem:[#allocation6 + $0x50] sm:$0xf]
    %v134 = vld [vmem:[#allocation6 + $0x54] sm:$0xff]
    %v135 = vld [vmem:[#allocation6 + $0x5c] sm:$0xf]
    %v136 = vld [vmem:[#allocation6 + $0x60] sm:$0xff]
    %v137 = vld [vmem:[#allocation6 + $0x68] sm:$0xf]
    %v138 = vld [vmem:[#allocation6 + $0x6c] sm:$0xff]
    %v139 = vld [vmem:[#allocation6 + $0x74] sm:$0xf]
    %v140 = vld [vmem:[#allocation6 + $0x78] sm:$0xff]
    %v141 = vld [vmem:[#allocation6 + $0x80] sm:$0xf]
    %v142 = vld [vmem:[#allocation6 + $0x84] sm:$0xff]
    %v143 = vld [vmem:[#allocation6 + $0x8c] sm:$0xf]
    %v144 = vld [vmem:[#allocation6 + $0x90] sm:$0xff]
    %v145 = vld [vmem:[#allocation6 + $0x98] sm:$0xf]
    %v146 = vld [vmem:[#allocation6 + $0x9c] sm:$0xff]
    %v147 = vld [vmem:[#allocation6 + $0xa4] sm:$0xf]
    %v148 = vld [vmem:[#allocation6 + $0xa8] sm:$0xff]
    %v149 = vld [vmem:[#allocation6 + $0xb0] sm:$0xf]
    %v150 = vld [vmem:[#allocation6 + $0xb4] sm:$0xff]
    %v151 = vld [vmem:[#allocation6 + $0xbc] sm:$0xf]
    %v160 = vunpack.c.l.b16 %v112
    %v161 = vunpack.c.l.b16 %v113
    %v162 = vunpack.c.l.b16 %v114
    %v163 = vunpack.c.l.b16 %v115
    %v164 = vunpack.c.l.b16 %v116
    %v165 = vunpack.c.l.b16 %v117
    %v166 = vunpack.c.l.b16 %v118
    %v167 = vunpack.c.l.b16 %v119
    %v168 = vpack.c.b16 %v161, %v160
    %v169 = vpack.c.b16 %v163, %v162
    %v170 = vpack.c.b16 %v165, %v164
    %v171 = vpack.c.b16 %v167, %v166
    %v208 = vunpack.c.l.b16 %v120
    %v209 = vunpack.c.h.b16 %v120
    %v210 = vunpack.c.l.b16 %v121
    %v211 = vunpack.c.l.b16 %v122
    %v212 = vunpack.c.h.b16 %v122
    %v213 = vunpack.c.l.b16 %v123
    %v214 = vunpack.c.l.b16 %v124
    %v215 = vunpack.c.h.b16 %v124
    %v216 = vunpack.c.l.b16 %v125
    %v217 = vunpack.c.l.b16 %v126
    %v218 = vunpack.c.h.b16 %v126
    %v219 = vunpack.c.l.b16 %v127
    %v220 = vunpack.c.l.b16 %v128
    %v221 = vunpack.c.h.b16 %v128
    %v222 = vunpack.c.l.b16 %v129
    %v223 = vunpack.c.l.b16 %v130
    %v224 = vunpack.c.h.b16 %v130
    %v225 = vunpack.c.l.b16 %v131
    %v226 = vunpack.c.l.b16 %v132
    %v227 = vunpack.c.h.b16 %v132
    %v228 = vunpack.c.l.b16 %v133
    %v229 = vunpack.c.l.b16 %v134
    %v230 = vunpack.c.h.b16 %v134
    %v231 = vunpack.c.l.b16 %v135
    %v232 = vunpack.c.l.b16 %v136
    %v233 = vunpack.c.h.b16 %v136
    %v234 = vunpack.c.l.b16 %v137
    %v235 = vunpack.c.l.b16 %v138
    %v236 = vunpack.c.h.b16 %v138
    %v237 = vunpack.c.l.b16 %v139
    %v238 = vunpack.c.l.b16 %v140
    %v239 = vunpack.c.h.b16 %v140
    %v240 = vunpack.c.l.b16 %v141
    %v241 = vunpack.c.l.b16 %v142
    %v242 = vunpack.c.h.b16 %v142
    %v243 = vunpack.c.l.b16 %v143
    %v244 = vunpack.c.l.b16 %v144
    %v245 = vunpack.c.h.b16 %v144
    %v246 = vunpack.c.l.b16 %v145
    %v247 = vunpack.c.l.b16 %v146
    %v248 = vunpack.c.h.b16 %v146
    %v249 = vunpack.c.l.b16 %v147
    %v250 = vunpack.c.l.b16 %v148
    %v251 = vunpack.c.h.b16 %v148
    %v252 = vunpack.c.l.b16 %v149
    %v253 = vunpack.c.l.b16 %v150
    %v254 = vunpack.c.h.b16 %v150
    %v255 = vunpack.c.l.b16 %v151
    %v256 = vpack.c.b16 %v211, %v208
    %v257 = vpack.c.b16 %v212, %v209
    %v258 = vpack.c.b16 %v213, %v210
    %v259 = vpack.c.b16 %v217, %v214
    %v260 = vpack.c.b16 %v218, %v215
    %v261 = vpack.c.b16 %v219, %v216
    %v262 = vpack.c.b16 %v223, %v220
    %v263 = vpack.c.b16 %v224, %v221
    %v264 = vpack.c.b16 %v225, %v222
    %v265 = vpack.c.b16 %v229, %v226
    %v266 = vpack.c.b16 %v230, %v227
    %v267 = vpack.c.b16 %v231, %v228
    %v268 = vpack.c.b16 %v235, %v232
    %v269 = vpack.c.b16 %v236, %v233
    %v270 = vpack.c.b16 %v237, %v234
    %v271 = vpack.c.b16 %v241, %v238
    %v272 = vpack.c.b16 %v242, %v239
    %v273 = vpack.c.b16 %v243, %v240
    %v274 = vpack.c.b16 %v247, %v244
    %v275 = vpack.c.b16 %v248, %v245
    %v276 = vpack.c.b16 %v249, %v246
    %v277 = vpack.c.b16 %v253, %v250
    %v278 = vpack.c.b16 %v254, %v251
    %v279 = vpack.c.b16 %v255, %v252
    %304 = vmatpush.bf16.msra.mxu0 %v277
    %305 = vmatpush.bf16.msra.mxu0 %v274
    %306 = vmatpush.bf16.msra.mxu0 %v271
    %307 = vmatpush.bf16.msra.mxu0 %v268
    %308 = vmatpush.bf16.msra.mxu0 %v265
    %309 = vmatpush.bf16.msra.mxu0 %v262
    %310 = vmatpush.bf16.msra.mxu0 %v259
    %311 = vmatpush.bf16.msra.mxu0 %v256
    %312 = vmatmul.bf16.gmra.mxu0 %v168
    %v313 = vpop.f32.mrf.mxu0
    %v314 = vadd.f32 0.0, %v313
    %v315 = vpop.f32.mrf.mxu0
    %v316 = vadd.f32 0.0, %v315
    %317 = vmatmul.bf16.gmra.mxu0 %v169
    %v318 = vpop.f32.mrf.mxu0
    %v319 = vadd.f32 0.0, %v318
    %v320 = vpop.f32.mrf.mxu0
    %v321 = vadd.f32 0.0, %v320
    %322 = vmatmul.bf16.gmra.mxu0 %v170
    %v323 = vpop.f32.mrf.mxu0
    %v324 = vadd.f32 0.0, %v323
    %v325 = vpop.f32.mrf.mxu0
    %v326 = vadd.f32 0.0, %v325
    %327 = vmatmul.bf16.gmra.mxu0 %v171
    %v328 = vpop.f32.mrf.mxu0
    %v329 = vadd.f32 0.0, %v328
    %v330 = vpop.f32.mrf.mxu0
    %v331 = vadd.f32 0.0, %v330
    %332 = vdwg.mxu0
    %333 = vmatpush.bf16.msra.mxu0 %v278
    %334 = vmatpush.bf16.msra.mxu0 %v275
    %335 = vmatpush.bf16.msra.mxu0 %v272
    %336 = vmatpush.bf16.msra.mxu0 %v269
    %337 = vmatpush.bf16.msra.mxu0 %v266
    %338 = vmatpush.bf16.msra.mxu0 %v263
    %339 = vmatpush.bf16.msra.mxu0 %v260
    %340 = vmatpush.bf16.msra.mxu0 %v257
    %341 = vmatmul.bf16.gmra.mxu0 %v168
    %v342 = vpop.f32.mrf.mxu0
    %v343 = vadd.f32 0.0, %v342
    %v344 = vpop.f32.mrf.mxu0
    %v345 = vadd.f32 0.0, %v344
    %346 = vmatmul.bf16.gmra.mxu0 %v169
    %v347 = vpop.f32.mrf.mxu0
    %v348 = vadd.f32 0.0, %v347
    %v349 = vpop.f32.mrf.mxu0
    %v350 = vadd.f32 0.0, %v349
    %351 = vmatmul.bf16.gmra.mxu0 %v170
    %v352 = vpop.f32.mrf.mxu0
    %v353 = vadd.f32 0.0, %v352
    %v354 = vpop.f32.mrf.mxu0
    %v355 = vadd.f32 0.0, %v354
    %356 = vmatmul.bf16.gmra.mxu0 %v171
    %v357 = vpop.f32.mrf.mxu0
    %v358 = vadd.f32 0.0, %v357
    %v359 = vpop.f32.mrf.mxu0
    %v360 = vadd.f32 0.0, %v359
    %361 = vdwg.mxu0
    %362 = vmatpush.bf16.msra.mxu0 %v279
    %363 = vmatpush.bf16.msra.mxu0 %v276
    %364 = vmatpush.bf16.msra.mxu0 %v273
    %365 = vmatpush.bf16.msra.mxu0 %v270
    %366 = vmatpush.bf16.msra.mxu0 %v267
    %367 = vmatpush.bf16.msra.mxu0 %v264
    %368 = vmatpush.bf16.msra.mxu0 %v261
    %369 = vmatpush.bf16.msra.mxu0 %v258
    %370 = vmatmul.bf16.gmra.mxu0 %v168
    %v371 = vpop.f32.mrf.mxu0
    %v372 = vadd.f32 0.0, %v371
    %v373 = vpop.f32.mrf.mxu0
    %v374 = vadd.f32 0.0, %v373
    %375 = vmatmul.bf16.gmra.mxu0 %v169
    %v376 = vpop.f32.mrf.mxu0
    %v377 = vadd.f32 0.0, %v376
    %v378 = vpop.f32.mrf.mxu0
    %v379 = vadd.f32 0.0, %v378
    %380 = vmatmul.bf16.gmra.mxu0 %v170
    %v381 = vpop.f32.mrf.mxu0
    %v382 = vadd.f32 0.0, %v381
    %v383 = vpop.f32.mrf.mxu0
    %v384 = vadd.f32 0.0, %v383
    %385 = vmatmul.bf16.gmra.mxu0 %v171
    %v386 = vpop.f32.mrf.mxu0
    %v387 = vadd.f32 0.0, %v386
    %v388 = vpop.f32.mrf.mxu0
    %v389 = vadd.f32 0.0, %v388
    %390 = vdwg.mxu0
    %v391 = vadd.f32 %v88, %v314
    %v392 = vadd.f32 %v89, %v343
    %v393 = vadd.f32 %v90, %v372
    %v394 = vadd.f32 %v91, %v316
    %v395 = vadd.f32 %v92, %v345
    %v396 = vadd.f32 %v93, %v374
    %v397 = vadd.f32 %v94, %v319
    %v398 = vadd.f32 %v95, %v348
    %v399 = vadd.f32 %v96, %v377
    %v400 = vadd.f32 %v97, %v321
    %v401 = vadd.f32 %v98, %v350
    %v402 = vadd.f32 %v99, %v379
    %v403 = vadd.f32 %v100, %v324
    %v404 = vadd.f32 %v101, %v353
    %v405 = vadd.f32 %v102, %v382
    %v406 = vadd.f32 %v103, %v326
    %v407 = vadd.f32 %v104, %v355
    %v408 = vadd.f32 %v105, %v384
    %v409 = vadd.f32 %v106, %v329
    %v410 = vadd.f32 %v107, %v358
    %v411 = vadd.f32 %v108, %v387
    %v412 = vadd.f32 %v109, %v331
    %v413 = vadd.f32 %v110, %v360
    %v414 = vadd.f32 %v111, %v389
    %415 = vst [vmem:[#allocation2] sm:$0xff] %v391
    %416 = vst [vmem:[#allocation2 + $0x8] sm:$0xff] %v392
    %417 = vst [vmem:[#allocation2 + $0x10] sm:$0xff] %v393
    %418 = vst [vmem:[#allocation2 + $0x18] sm:$0xff] %v394
    %419 = vst [vmem:[#allocation2 + $0x20] sm:$0xff] %v395
    %420 = vst [vmem:[#allocation2 + $0x28] sm:$0xff] %v396
    %421 = vst [vmem:[#allocation2 + $0x30] sm:$0xff] %v397
    %422 = vst [vmem:[#allocation2 + $0x38] sm:$0xff] %v398
    %423 = vst [vmem:[#allocation2 + $0x40] sm:$0xff] %v399
    %424 = vst [vmem:[#allocation2 + $0x48] sm:$0xff] %v400
    %425 = vst [vmem:[#allocation2 + $0x50] sm:$0xff] %v401
    %426 = vst [vmem:[#allocation2 + $0x58] sm:$0xff] %v402
    %427 = vst [vmem:[#allocation2 + $0x60] sm:$0xff] %v403
    %428 = vst [vmem:[#allocation2 + $0x68] sm:$0xff] %v404
    %429 = vst [vmem:[#allocation2 + $0x70] sm:$0xff] %v405
    %430 = vst [vmem:[#allocation2 + $0x78] sm:$0xff] %v406
    %431 = vst [vmem:[#allocation2 + $0x80] sm:$0xff] %v407
    %432 = vst [vmem:[#allocation2 + $0x88] sm:$0xff] %v408
    %433 = vst [vmem:[#allocation2 + $0x90] sm:$0xff] %v409
    %434 = vst [vmem:[#allocation2 + $0x98] sm:$0xff] %v410
    %435 = vst [vmem:[#allocation2 + $0xa0] sm:$0xff] %v411
    %436 = vst [vmem:[#allocation2 + $0xa8] sm:$0xff] %v412
    %437 = vst [vmem:[#allocation2 + $0xb0] sm:$0xff] %v413
    %438 = vst [vmem:[#allocation2 + $0xb8] sm:$0xff] %v414
    // Predicated region
    $region30: #{_mm_call.1} parent=1 // pred_check
      %p439 = pneg %p60
    $region31: #{_mm_call.1} parent=1 // pred_check_branch
      %441 = sbr.rel (%p439) target = $region33
    $region32: #{_mm_call.1} parent=1 // pred_region
      %v442 = vld [vmem:[#allocation2] sm:$0xff]
      %v443 = vld [vmem:[#allocation2 + $0x8] sm:$0xff]
      %v444 = vld [vmem:[#allocation2 + $0x10] sm:$0xff]
      %v445 = vld [vmem:[#allocation2 + $0x18] sm:$0xff]
      %v446 = vld [vmem:[#allocation2 + $0x20] sm:$0xff]
      %v447 = vld [vmem:[#allocation2 + $0x28] sm:$0xff]
      %v448 = vld [vmem:[#allocation2 + $0x30] sm:$0xff]
      %v449 = vld [vmem:[#allocation2 + $0x38] sm:$0xff]
      %v450 = vld [vmem:[#allocation2 + $0x40] sm:$0xff]
      %v451 = vld [vmem:[#allocation2 + $0x48] sm:$0xff]
      %v452 = vld [vmem:[#allocation2 + $0x50] sm:$0xff]
      %v453 = vld [vmem:[#allocation2 + $0x58] sm:$0xff]
      %v454 = vld [vmem:[#allocation2 + $0x60] sm:$0xff]
      %v455 = vld [vmem:[#allocation2 + $0x68] sm:$0xff]
      %v456 = vld [vmem:[#allocation2 + $0x70] sm:$0xff]
      %v457 = vld [vmem:[#allocation2 + $0x78] sm:$0xff]
      %v458 = vld [vmem:[#allocation2 + $0x80] sm:$0xff]
      %v459 = vld [vmem:[#allocation2 + $0x88] sm:$0xff]
      %v460 = vld [vmem:[#allocation2 + $0x90] sm:$0xff]
      %v461 = vld [vmem:[#allocation2 + $0x98] sm:$0xff]
      %v462 = vld [vmem:[#allocation2 + $0xa0] sm:$0xff]
      %v463 = vld [vmem:[#allocation2 + $0xa8] sm:$0xff]
      %v464 = vld [vmem:[#allocation2 + $0xb0] sm:$0xff]
      %v465 = vld [vmem:[#allocation2 + $0xb8] sm:$0xff]
      %v466 = vld [vmem:[#allocation8] sm:$0x7]
      %v468 = vperm.slane %v466, 0
      %v469 = vperm.slane %v466, 1
      %v470 = vperm.slane %v466, 2
      %v474 = vadd.f32 %v442, %v468
      %v475 = vadd.f32 %v443, %v469
      %v476 = vadd.f32 %v444, %v470
      %v477 = vadd.f32 %v445, %v468
      %v478 = vadd.f32 %v446, %v469
      %v479 = vadd.f32 %v447, %v470
      %v480 = vadd.f32 %v448, %v468
      %v481 = vadd.f32 %v449, %v469
      %v482 = vadd.f32 %v450, %v470
      %v483 = vadd.f32 %v451, %v468
      %v484 = vadd.f32 %v452, %v469
      %v485 = vadd.f32 %v453, %v470
      %v486 = vadd.f32 %v454, %v468
      %v487 = vadd.f32 %v455, %v469
      %v488 = vadd.f32 %v456, %v470
      %v489 = vadd.f32 %v457, %v468
      %v490 = vadd.f32 %v458, %v469
      %v491 = vadd.f32 %v459, %v470
      %v492 = vadd.f32 %v460, %v468
      %v493 = vadd.f32 %v461, %v469
      %v494 = vadd.f32 %v462, %v470
      %v495 = vadd.f32 %v463, %v468
      %v496 = vadd.f32 %v464, %v469
      %v497 = vadd.f32 %v465, %v470
      %v498 = vpack.c.bf16 %v475, %v474
      %v499 = vpack.c.bf16 %v476, %v476
      %v500 = vpack.c.bf16 %v478, %v477
      %v501 = vpack.c.bf16 %v479, %v479
      %v502 = vpack.c.bf16 %v481, %v480
      %v503 = vpack.c.bf16 %v482, %v482
      %v504 = vpack.c.bf16 %v484, %v483
      %v505 = vpack.c.bf16 %v485, %v485
      %v506 = vpack.c.bf16 %v487, %v486
      %v507 = vpack.c.bf16 %v488, %v488
      %v508 = vpack.c.bf16 %v490, %v489
      %v509 = vpack.c.bf16 %v491, %v491
      %v510 = vpack.c.bf16 %v493, %v492
      %v511 = vpack.c.bf16 %v494, %v494
      %v512 = vpack.c.bf16 %v496, %v495
      %v513 = vpack.c.bf16 %v497, %v497
      %514 = vst [vmem:[#allocation9] sm:$0xff] %v498
      %515 = vst [vmem:[#allocation9 + $0x8] sm:$0xf] %v499
      %516 = vst [vmem:[#allocation9 + $0xc] sm:$0xff] %v500
      %517 = vst [vmem:[#allocation9 + $0x14] sm:$0xf] %v501
      %518 = vst [vmem:[#allocation9 + $0x18] sm:$0xff] %v502
      %519 = vst [vmem:[#allocation9 + $0x20] sm:$0xf] %v503
      %520 = vst [vmem:[#allocation9 + $0x24] sm:$0xff] %v504
      %521 = vst [vmem:[#allocation9 + $0x2c] sm:$0xf] %v505
      %522 = vst [vmem:[#allocation9 + $0x30] sm:$0xff] %v506
      %523 = vst [vmem:[#allocation9 + $0x38] sm:$0xf] %v507
      %524 = vst [vmem:[#allocation9 + $0x3c] sm:$0xff] %v508
      %525 = vst [vmem:[#allocation9 + $0x44] sm:$0xf] %v509
      %526 = vst [vmem:[#allocation9 + $0x48] sm:$0xff] %v510
      %527 = vst [vmem:[#allocation9 + $0x50] sm:$0xf] %v511
      %528 = vst [vmem:[#allocation9 + $0x54] sm:$0xff] %v512
      %529 = vst [vmem:[#allocation9 + $0x5c] sm:$0xf] %v513
    $region33: #{_mm_call.1} parent=1 // pred_fallthru
      _
    // Predicated region
    $region34: #{_mm_call.1} parent=1 // pred_check
      _
    $region35: #{_mm_call.1} parent=1 // pred_check_branch
      %531 = sbr.rel (0) target = $region37
    $region36: #{_mm_call.1} parent=1 // pred_region
      %533 = vsyncadd [#allocation5], 0
      %s534 = sshll.u32 [#allocation9], 4
      %s535 = int_to_ptr.vmem [resolvable:$true] %s534
      %s536 = sshll.u32 %s3, 4
      %s537 = int_to_ptr.hbm [resolvable:$true] %s536
      %542 = dma.vmem_to_hbm [thread:$0]  %s535, 1536, %s537, [#allocation5], 192, 192, 12
    $region37: #{_mm_call.1} parent=1 // pred_fallthru
      _
    // Predicated region
    $region38: #{_mm_call.1} parent=1 // pred_check
      _
    $region39: #{_mm_call.1} parent=1 // pred_check_branch
      %544 = sbr.rel (0) target = $region41
    $region40: #{_mm_call.1} parent=1 // pred_region
      %546 = dma.done [#allocation5], 1536
    $region41: #{_mm_call.1} parent=1 // pred_fallthru
      _
    %547 = vsyncpa [#allocation4], 1
    %548 = vsyncpa [#allocation7], 1
    %549 = vsyncpa [#allocation5], 1

</llo_original>
